<compile_context>
chip_gen: v6e
topology: v6e:2x2x1
jax: 0.10.0
libtpu: 0.0.40
codegen_flags: <defaults>
</compile_context>

<pallas_src>
import functools
import math

import jax
import jax.numpy as jnp
from jax import lax
from jax.experimental import pallas as pl
from jax.experimental.pallas import tpu as pltpu


# --------------------------------------------------------------------------
# Helpers
# --------------------------------------------------------------------------
def _cdiv(a, b):
    return -(-a // b)


def _round_up(a, b):
    return _cdiv(a, b) * b


def _choose_layout(n):
    """Pick the widest lane count that divides n (no pad => no HBM copy)."""
    for lane in (512, 256, 128):
        if n % lane == 0:
            return lane, 0
    return 128, (-n) % 128


def _hw_config():
    """Return (num_tensorcores, f32_block_elems_per_input, vmem_limit_bytes).

    Conservative defaults (4 MiB blocks, 32 MiB scoped VMEM) if detection
    fails; those are valid on every TPU generation.
    """
    kind = ""
    try:
        kind = (jax.devices()[0].device_kind or "").lower()
    except Exception:
        pass
    # v7x has 2 TensorCores per chip; v5e/v6e have 1.
    num_tc = 2 if "7" in kind else 1

    big_vmem = False
    try:
        info = pltpu.get_tpu_info()
        vb = getattr(info, "vmem_capacity_bytes", None)
        if isinstance(vb, int) and vb >= 100 * 1024 * 1024:
            big_vmem = True
    except Exception:
        pass

    if big_vmem and num_tc == 1:
        # 128 MiB-VMEM chips (v5e / v6e): 8 MiB f32 blocks per input.
        return num_tc, 2 << 20, 64 * 1024 * 1024
    # v7x (64 MiB VMEM per TC) and unknown chips: 4 MiB blocks per input.
    return num_tc, 1 << 20, 32 * 1024 * 1024


# --------------------------------------------------------------------------
# Kernels
# --------------------------------------------------------------------------
def _charb_sum_kernel(p_ref, t_ref, o_ref, *, eps, block_rows, steps, parts,
                      valid_rows, needs_mask, acc_rows):
    """Per-partition running sum of sqrt((p - t)^2 + eps) into o_ref."""
    part = pl.program_id(0)      # partition (parallel; one per TC on v7x)
    k = pl.program_id(1)         # reduction step (arbitrary)

    @pl.when(k == 0)
    def _():
        o_ref[...] = jnp.zeros_like(o_ref)

    d = p_ref[...].astype(jnp.float32) - t_ref[...].astype(jnp.float32)
    v = jnp.sqrt(d * d + jnp.float32(eps))
    lane = v.shape[-1]

    def _accumulate(x):
        if acc_rows == 8:
            # Full-vreg VPU adds into an (8, lane) accumulator; no per-step
            # cross-sublane (XLU) reduce, and 8x more parallel f32 sum chains.
            o_ref[...] += jnp.sum(x.reshape(-1, 8, lane), axis=0)
        else:
            # Tiny single-block case (rows not a multiple of 8).
            o_ref[...] += jnp.sum(x, axis=0, keepdims=True)

    if needs_mask:
        # Only the globally-last block overhangs the slab; every other step
        # takes the unmasked fast path (scalar predicate, not per-element).
        is_last = (part == parts - 1) & (k == steps - 1)

        @pl.when(is_last)
        def _():
            row0 = (part * steps + k) * block_rows
            rid = row0 + lax.broadcasted_iota(jnp.int32, (block_rows, 1), 0)
            _accumulate(jnp.where(rid < valid_rows, v, jnp.float32(0.0)))

        @pl.when(jnp.logical_not(is_last))
        def _():
            _accumulate(v)
    else:
        _accumulate(v)


def _charb_elem_kernel(p_ref, t_ref, o_ref, *, eps, scale):
    """Elementwise loss_weight * sqrt((p - t)^2 + eps) (reduction='none')."""
    d = p_ref[...].astype(jnp.float32) - t_ref[...].astype(jnp.float32)
    v = jnp.float32(scale) * jnp.sqrt(d * d + jnp.float32(eps))
    o_ref[...] = v.astype(o_ref.dtype)


# --------------------------------------------------------------------------
# Wrapper
# --------------------------------------------------------------------------
def charbonnier_loss(pred, target, weight=None, *, loss_weight=1.0,
                     reduction="mean", eps=1e-12, max_block_elems=None,
                     num_partitions=None):
    """JAX/Pallas equivalent of basicsr CharbonnierLoss.forward (weight=None)."""
    if reduction not in ("none", "mean", "sum"):
        raise ValueError(f"Unsupported reduction mode: {reduction}")
    if weight is not None:
        # TODO(synk): element-wise `weight` path of @weighted_loss not implemented.
        raise NotImplementedError("weight is not supported in this kernel")

    assert pred.shape == target.shape
    orig_shape = pred.shape
    n = pred.size
    itemsize = jnp.dtype(pred.dtype).itemsize
    row_tile = max(8, 32 // itemsize)          # 8 f32, 16 bf16/fp16, 32 int8

    num_tc, f32_block_elems, vmem_limit = _hw_config()

    lane, n_pad = _choose_layout(n)
    p_flat = pred.reshape(-1)
    t_flat = target.reshape(-1)
    if n_pad:
        # Only hit when n is not a multiple of 128 (one extra HBM pass).
        p_flat = jnp.pad(p_flat, (0, n_pad))
        t_flat = jnp.pad(t_flat, (0, n_pad))
    rows = (n + n_pad) // lane
    p2d = p_flat.reshape(rows, lane)
    t2d = t_flat.reshape(rows, lane)

    # ---- 'none': elementwise map ------------------------------------------
    if reduction == "none":
        if max_block_elems is None:
            # 3 arrays x 2 pipeline buffers must fit the scoped budget on every
            # generation; cap at ~4 MiB physical per array block.
            block_elems = min(f32_block_elems, 1 << 20) * 4 // itemsize
        else:
            block_elems = int(max_block_elems)
        max_rows = max(row_tile, (block_elems // lane) // row_tile * row_tile)
        block_rows = rows if rows <= max_rows else max_rows
        num_blocks = _cdiv(rows, block_rows)

        cost = pl.CostEstimate(flops=4 * n, transcendentals=n,
                               bytes_accessed=3 * rows * lane * itemsize)
        out = pl.pallas_call(
            functools.partial(_charb_elem_kernel, eps=float(eps),
                              scale=float(loss_weight)),
            out_shape=jax.ShapeDtypeStruct((rows, lane), pred.dtype),
            grid_spec=pltpu.PrefetchScalarGridSpec(
                num_scalar_prefetch=0,
                grid=(num_blocks,),
                in_specs=[pl.BlockSpec((block_rows, lane), lambda i: (i, 0)),
                          pl.BlockSpec((block_rows, lane), lambda i: (i, 0))],
                out_specs=pl.BlockSpec((block_rows, lane), lambda i: (i, 0)),
            ),
            compiler_params=pltpu.CompilerParams(
                dimension_semantics=("parallel",),
                vmem_limit_bytes=vmem_limit),
            cost_estimate=cost,
        )(p2d, t2d)
        if n_pad:
            out = out.reshape(-1)[:n]
        return out.reshape(orig_shape)

    # ---- 'mean' / 'sum': in-kernel streaming reduction ---------------------
    if max_block_elems is None:
        block_elems = f32_block_elems * 4 // itemsize   # ~constant bytes/block
    else:
        block_elems = int(max_block_elems)
    max_rows = max(row_tile, (block_elems // lane) // row_tile * row_tile)

    if rows <= max_rows:
        block_rows, num_blocks = rows, 1
    else:
        block_rows, num_blocks = max_rows, _cdiv(rows, max_rows)

    parts = num_tc if num_partitions is None else int(num_partitions)
    parts = 2 if (parts >= 2 and num_blocks >= 2) else 1
    if parts == 2 and num_blocks % 2 != 0:
        # Rebalance block_rows so both TensorCores get exactly num_blocks/2
        # blocks (no clamped duplicate-block DMA).  Fall back to a single
        # sequential partition if no tile-aligned even split exists.
        rebalanced = False
        nb = num_blocks + 1
        while nb <= num_blocks + 9:
            br = _round_up(_cdiv(rows, nb), row_tile)
            if br <= max_rows and _cdiv(rows, br) == nb:
                block_rows, num_blocks, rebalanced = br, nb, True
                break
            nb += 2
        if not rebalanced:
            parts = 1
    steps = num_blocks // parts                 # exact: parts * steps == num_blocks

    acc_rows = 8 if block_rows % 8 == 0 else 1  # acc_rows==1 only for 1 tiny block
    needs_mask = (num_blocks * block_rows != rows)

    def in_map(p, k):
        return (p * steps + k, 0)

    cost = pl.CostEstimate(
        flops=5 * n, transcendentals=n,
        bytes_accessed=2 * rows * lane * itemsize + parts * acc_rows * lane * 4)

    partials = pl.pallas_call(
        functools.partial(_charb_sum_kernel, eps=float(eps),
                          block_rows=block_rows, steps=steps, parts=parts,
                          valid_rows=rows, needs_mask=needs_mask,
                          acc_rows=acc_rows),
        out_shape=jax.ShapeDtypeStruct((parts * acc_rows, lane), jnp.float32),
        grid_spec=pltpu.PrefetchScalarGridSpec(
            num_scalar_prefetch=0,
            grid=(parts, steps),
            in_specs=[pl.BlockSpec((block_rows, lane), in_map),
                      pl.BlockSpec((block_rows, lane), in_map)],
            out_specs=pl.BlockSpec((acc_rows, lane), lambda p, k: (p, 0)),
        ),
        compiler_params=pltpu.CompilerParams(
            dimension_semantics=("parallel", "arbitrary"),
            vmem_limit_bytes=vmem_limit),
        cost_estimate=cost,
    )(p2d, t2d)

    # Tiny epilogue: collapse to scalar, remove zero-pad contribution, scale.
    total = jnp.sum(partials)
    if n_pad:
        total = total - jnp.float32(n_pad * math.sqrt(float(eps)))
    scale = float(loss_weight) / float(n) if reduction == "mean" \
        else float(loss_weight)
    return (total * jnp.float32(scale)).astype(pred.dtype)


class CharbonnierLoss:
    """Mirror of the PyTorch module's constructor/forward (no parameters)."""

    def __init__(self, loss_weight=1.0, reduction="mean", eps=1e-12):
        if reduction not in ("none", "mean", "sum"):
            raise ValueError(f"Unsupported reduction mode: {reduction}")
        self.loss_weight = loss_weight
        self.reduction = reduction
        self.eps = eps

    def __call__(self, pred, target, weight=None):
        return charbonnier_loss(pred, target, weight,
                                loss_weight=self.loss_weight,
                                reduction=self.reduction, eps=self.eps)


# --------------------------------------------------------------------------
# Main
# --------------------------------------------------------------------------
if __name__ == "__main__":
    key = jax.random.PRNGKey(0)
    k1, k2 = jax.random.split(key)
    eps = 1e-12

    # NCHW inputs, small shape.
    pred = jax.random.normal(k1, (2, 4, 16, 16), dtype=jnp.float32)
    target = jax.random.normal(k2, (2, 4, 16, 16), dtype=jnp.float32)
    ref_elem = jnp.sqrt((pred - target) ** 2 + eps)

    # reduction='mean'
    loss = CharbonnierLoss(loss_weight=1.0, reduction="mean", eps=eps)(pred, target)
    loss = jax.block_until_ready(loss)
    assert jnp.allclose(loss, jnp.mean(ref_elem), rtol=1e-5, atol=1e-6), (
        loss, jnp.mean(ref_elem))

    # reduction='sum' with loss_weight
    loss_sum = CharbonnierLoss(loss_weight=0.5, reduction="sum", eps=eps)(pred, target)
    loss_sum = jax.block_until_ready(loss_sum)
    assert jnp.allclose(loss_sum, 0.5 * jnp.sum(ref_elem), rtol=1e-5, atol=1e-4), (
        loss_sum, 0.5 * jnp.sum(ref_elem))

    # reduction='none'
    loss_none = CharbonnierLoss(loss_weight=1.0, reduction="none", eps=eps)(pred, target)
    loss_none = jax.block_until_ready(loss_none)
    assert loss_none.shape == pred.shape
    assert jnp.allclose(loss_none, ref_elem, rtol=1e-5, atol=1e-6)

    # Multi-block + ragged-tail (masked last block) path at a small scale.
    pred2 = jax.random.normal(k1, (2, 4, 17, 16), dtype=jnp.float32)
    target2 = jax.random.normal(k2, (2, 4, 17, 16), dtype=jnp.float32)
    loss2 = charbonnier_loss(pred2, target2, reduction="mean", eps=eps,
                             max_block_elems=1024)
    loss2 = jax.block_until_ready(loss2)
    ref2 = jnp.mean(jnp.sqrt((pred2 - target2) ** 2 + eps))
    assert jnp.allclose(loss2, ref2, rtol=1e-5, atol=1e-6), (loss2, ref2)

    # Forced 2-partition path with an odd block count: exercises the exact
    # even-split rebalance (runs correctly even on single-TensorCore chips).
    pred3 = jax.random.normal(k1, (2, 4, 64, 64), dtype=jnp.float32)
    target3 = jax.random.normal(k2, (2, 4, 64, 64), dtype=jnp.float32)
    loss3 = charbonnier_loss(pred3, target3, reduction="sum", eps=eps,
                             max_block_elems=12288, num_partitions=2)
    loss3 = jax.block_until_ready(loss3)
    ref3 = jnp.sum(jnp.sqrt((pred3 - target3) ** 2 + eps))
    assert jnp.allclose(loss3, ref3, rtol=1e-5, atol=1e-2), (loss3, ref3)

    # Forced 2-partition where no even split exists -> falls back to 1
    # partition with a masked ragged tail.
    pred4 = jax.random.normal(k1, (1, 5, 32, 128), dtype=jnp.float32)
    target4 = jax.random.normal(k2, (1, 5, 32, 128), dtype=jnp.float32)
    loss4 = charbonnier_loss(pred4, target4, reduction="mean", eps=eps,
                             max_block_elems=8192, num_partitions=2)
    loss4 = jax.block_until_ready(loss4)
    ref4 = jnp.mean(jnp.sqrt((pred4 - target4) ** 2 + eps))
    assert jnp.allclose(loss4, ref4, rtol=1e-5, atol=1e-6), (loss4, ref4)

    # bf16 inputs (dtype-scaled block sizes / sublane tiling path).
    pred_bf = pred.astype(jnp.bfloat16)
    target_bf = target.astype(jnp.bfloat16)
    loss_bf = charbonnier_loss(pred_bf, target_bf, reduction="mean", eps=eps)
    loss_bf = jax.block_until_ready(loss_bf)
    ref_bf = jnp.mean(jnp.sqrt((pred_bf.astype(jnp.float32)
                                - target_bf.astype(jnp.float32)) ** 2 + eps))
    assert jnp.allclose(loss_bf.astype(jnp.float32), ref_bf, rtol=2e-2), (
        loss_bf, ref_bf)

    print("KERNEL_OK")
</pallas_src>

<mosaic_0001>
module attributes {stable_mosaic.version = 11 : i64} {
  func.func @_charb_sum_kernel(%arg0: i32, %arg1: i32, %arg2: memref<4x512xf32, #tpu.memory_space<vmem>>, %arg3: memref<4x512xf32, #tpu.memory_space<vmem>>, %arg4: memref<1x512xf32, #tpu.memory_space<vmem>>) attributes {dimension_semantics = [#tpu.dimension_semantics<parallel>, #tpu.dimension_semantics<arbitrary>], iteration_bounds = array<i64: 1, 1>, scalar_prefetch = 0 : i64, scratch_operands = 0 : i64, tpu.core_type = #tpu.core_type<tc>, window_params = [{transform_indices = @transform_0, window_bounds = array<i64: 4, 512>}, {transform_indices = @transform_1, window_bounds = array<i64: 4, 512>}, {transform_indices = @transform_2, window_bounds = array<i64: 1, 512>}]} {
    %c0_i32 = arith.constant 0 : i32
    %0 = arith.cmpi eq, %arg1, %c0_i32 : i32
    %1 = arith.extui %0 : i1 to i32
    %c0_i32_0 = arith.constant 0 : i32
    %2 = arith.cmpi ne, %1, %c0_i32_0 : i32
    scf.if %2 {
      %cst_9 = arith.constant 0.000000e+00 : f32
      %15 = vector.broadcast %cst_9 : f32 to vector<1x512xf32>
      %c0_10 = arith.constant 0 : index
      %c0_11 = arith.constant 0 : index
      %16 = vector.load %arg4[%c0_10, %c0_11] : memref<1x512xf32, #tpu.memory_space<vmem>>, vector<1x512xf32>
      tpu.vector_store %arg4[%c0_10, %c0_11], %15 {strides = array<i32>} : memref<1x512xf32, #tpu.memory_space<vmem>>, vector<1x512xf32>,
    } else {
    }
    %c0 = arith.constant 0 : index
    %c0_1 = arith.constant 0 : index
    %3 = vector.load %arg2[%c0, %c0_1] : memref<4x512xf32, #tpu.memory_space<vmem>>, vector<4x512xf32>
    %c0_2 = arith.constant 0 : index
    %c0_3 = arith.constant 0 : index
    %4 = vector.load %arg3[%c0_2, %c0_3] : memref<4x512xf32, #tpu.memory_space<vmem>>, vector<4x512xf32>
    %5 = arith.subf %3, %4 : vector<4x512xf32>
    %6 = arith.mulf %5, %5 : vector<4x512xf32>
    %cst = arith.constant 9.99999996E-13 : f32
    %7 = vector.broadcast %cst : f32 to vector<4x512xf32>
    %8 = arith.addf %6, %7 : vector<4x512xf32>
    %9 = math.sqrt %8 : vector<4x512xf32>
    %c0_4 = arith.constant 0 : index
    %c0_5 = arith.constant 0 : index
    %10 = vector.load %arg4[%c0_4, %c0_5] : memref<1x512xf32, #tpu.memory_space<vmem>>, vector<1x512xf32>
    %cst_6 = arith.constant dense<0.000000e+00> : vector<512xf32>
    %11 = vector.multi_reduction <add>, %9, %cst_6 [0] : vector<4x512xf32> to vector<512xf32>
    %12 = vector.shape_cast %11 : vector<512xf32> to vector<1x512xf32>
    %13 = arith.addf %10, %12 : vector<1x512xf32>
    %c0_7 = arith.constant 0 : index
    %c0_8 = arith.constant 0 : index
    %14 = vector.load %arg4[%c0_7, %c0_8] : memref<1x512xf32, #tpu.memory_space<vmem>>, vector<1x512xf32>
    tpu.vector_store %arg4[%c0_7, %c0_8], %13 {strides = array<i32>} : memref<1x512xf32, #tpu.memory_space<vmem>>, vector<1x512xf32>,
    return
  }
  func.func @transform_0(%arg0: i32, %arg1: i32) -> (i32, i32) {
    %c1_i32 = arith.constant 1 : i32
    %0 = arith.muli %arg0, %c1_i32 : i32
    %1 = arith.addi %0, %arg1 : i32
    %c0_i32 = arith.constant 0 : i32
    %c0_i32_0 = arith.constant 0 : i32
    return %1, %c0_i32 : i32, i32
  }
  func.func @transform_1(%arg0: i32, %arg1: i32) -> (i32, i32) {
    %c1_i32 = arith.constant 1 : i32
    %0 = arith.muli %arg0, %c1_i32 : i32
    %1 = arith.addi %0, %arg1 : i32
    %c0_i32 = arith.constant 0 : i32
    %c0_i32_0 = arith.constant 0 : i32
    return %1, %c0_i32 : i32, i32
  }
  func.func @transform_2(%arg0: i32, %arg1: i32) -> (i32, i32) {
    %c0_i32 = arith.constant 0 : i32
    %c0_i32_0 = arith.constant 0 : i32
    return %arg0, %c0_i32 : i32, i32
  }
}

</mosaic_0001>

<llo_original>
// kernel: tpu_custom_call.1
$region0: #{tpu_custom_call.1}
  #allocation0 [shape = 'u32[]', space=smem, size = 0x4, offset = 0x4, fixed_abs, tag = 'smem constant byte address 0x4 - core index']
  #allocation1 [shape = 'u32[144,128]{1,0:T(1,128)}', space=vmem, size = 0x12000, scoped, tag = 'internal scratch']
  %s0 = inlined_call_operand.hbm [shape: f32[4,512], index: 0, kind: input, shape index: {}]
  %s1 = inlined_call_operand.hbm [shape: f32[4,512], index: 1, kind: input, shape index: {}]
  %s2 = inlined_call_operand.hbm [shape: f32[1,512], index: 2, kind: output, shape index: {}]
  %s3 = sld [smem:[#allocation0]]
  $region30: #{tpu_custom_call.1} parent=0
    _
  %s5 = ssub.s32 1, %s3
  %s6 = scalar_select 0, %s5, %s3
  $region1: #{tpu_custom_call.1} parent=0
    #allocation2 [shape = 'u8[8192]{0}', space=vmem, size = 0x2000, scoped, tag = 'input window, operand 0, single buffered']
    #allocation3 [shape = 's32[1]{0}', space=sflag, size = 0x4, scoped, tag = 'scoped memory for tpu_custom_call.1']
    #allocation4 [shape = 's32[1]{0}', space=sflag, size = 0x4, scoped, tag = 'scoped memory for tpu_custom_call.1']
    #allocation5 [shape = 'u8[8192]{0}', space=vmem, size = 0x2000, scoped, tag = 'input window, operand 1, single buffered']
    #allocation6 [shape = 's32[1]{0}', space=sflag, size = 0x4, scoped, tag = 'scoped memory for tpu_custom_call.1']
    #allocation7 [shape = 'u8[2048]{0}', space=vmem, size = 0x800, scoped, tag = 'output window, operand 0, single buffered']
    %7 = vsyncpa [#allocation3], 0
    %8 = vsyncpa [#allocation6], 0
    %9 = vsyncpa [#allocation4], 0
    // Predicated region
    $region2: #{tpu_custom_call.1} parent=1 // pred_check
      _
    $region3: #{tpu_custom_call.1} parent=1 // pred_check_branch
      %11 = sbr.rel (0) target = $region5
    $region4: #{tpu_custom_call.1} parent=1 // pred_region
      %s12 = sadd.s32 0, 0
      %s14 = ssub.s32 256, 256
      %15 = vsyncadd [#allocation3], %s14
      %s16 = smul.addr %s12, 4
      %s17 = smul.addr %s16, 64
      %s18 = scalar_lea.hbm %s0, %s17
      %s20 = sshll.u32 [#allocation2], 4
      %s21 = int_to_ptr.vmem [resolvable:$true] %s20
      %23 = dma.hbm_to_vmem [thread:$0]  %s18, 256, %s21, [#allocation3]
    $region5: #{tpu_custom_call.1} parent=1 // pred_fallthru
      _
    // Predicated region
    $region6: #{tpu_custom_call.1} parent=1 // pred_check
      _
    $region7: #{tpu_custom_call.1} parent=1 // pred_check_branch
      %25 = sbr.rel (0) target = $region9
    $region8: #{tpu_custom_call.1} parent=1 // pred_region
      %s26 = sadd.s32 0, 0
      %s28 = ssub.s32 256, 256
      %29 = vsyncadd [#allocation6], %s28
      %s30 = smul.addr %s26, 4
      %s31 = smul.addr %s30, 64
      %s32 = scalar_lea.hbm %s1, %s31
      %s34 = sshll.u32 [#allocation5], 4
      %s35 = int_to_ptr.vmem [resolvable:$true] %s34
      %37 = dma.hbm_to_vmem [thread:$0]  %s32, 256, %s35, [#allocation6]
    $region9: #{tpu_custom_call.1} parent=1 // pred_fallthru
      _
    // Predicated region
    $region10: #{tpu_custom_call.1} parent=1 // pred_check
      _
    $region11: #{tpu_custom_call.1} parent=1 // pred_check_branch
      %39 = sbr.rel (0) target = $region13
    $region12: #{tpu_custom_call.1} parent=1 // pred_region
      %40 = dma.done [#allocation3], 256
    $region13: #{tpu_custom_call.1} parent=1 // pred_fallthru
      _
    // Predicated region
    $region14: #{tpu_custom_call.1} parent=1 // pred_check
      _
    $region15: #{tpu_custom_call.1} parent=1 // pred_check_branch
      %42 = sbr.rel (0) target = $region17
    $region16: #{tpu_custom_call.1} parent=1 // pred_region
      %43 = dma.done [#allocation6], 256
    $region17: #{tpu_custom_call.1} parent=1 // pred_fallthru
      _
    %s44 = sadd.s32 0, 0
    %s45 = sadd.s32 0, 0
    %p46 = scmp.eq.s32.totalorder 0, 0
    // Predicated region
    $region18: #{tpu_custom_call.1} parent=1 // pred_check
      %p47 = pneg %p46
    $region19: #{tpu_custom_call.1} parent=1 // pred_check_branch
      %49 = sbr.rel (%p47) target = $region21
    $region20: #{tpu_custom_call.1} parent=1 // pred_region
      %v50 = vlaneseq
      %vm51 = vcmp.ge.s32.totalorder %v50, 0
      %vm52 = vcmp.lt.s32.totalorder %v50, 512
      %vm53 = vmand %vm51, %vm52
      %54 = vst.msk [vmem:[#allocation7] sm:$0xf] %vm53, 0.0
    $region21: #{tpu_custom_call.1} parent=1 // pred_fallthru
      _
    %v55 = vld [vmem:[#allocation2] sm:$0xff]
    %v56 = vld [vmem:[#allocation2 + $0x8] sm:$0xff]
    %v57 = vld [vmem:[#allocation5] sm:$0xff]
    %v58 = vld [vmem:[#allocation5 + $0x8] sm:$0xff]
    %v59 = vsub.f32 %v55, %v57
    %v60 = vsub.f32 %v56, %v58
    %v61 = vmul.f32 %v59, %v59
    %v62 = vmul.f32 %v60, %v60
    %v63 = vadd.f32 %v61, 1e-12
    %v64 = vadd.f32 %v62, 1e-12
    %v65 = vrsqrt.pop %v63
    %v66 = vmul.f32 %v63, %v65
    %vm67 = vcmp.eq.f32.partialorder %v63, inf
    %v68 = vsel %vm67, %v63, %v66
    %vm69 = vcmp.eq.f32.partialorder %v63, 0.0
    %v70 = vand.u32 %v63, 2147483648
    %v71 = vsel %vm69, %v70, %v68
    %v72 = vrsqrt.pop %v64
    %v73 = vmul.f32 %v64, %v72
    %vm74 = vcmp.eq.f32.partialorder %v64, inf
    %v75 = vsel %vm74, %v64, %v73
    %vm76 = vcmp.eq.f32.partialorder %v64, 0.0
    %v77 = vand.u32 %v64, 2147483648
    %v78 = vsel %vm76, %v77, %v75
    %v79 = vld [vmem:[#allocation7] sm:$0xf]
    %v82 = vcombine.high %v71, %v71
    %v83 = vcombine.high %v78, %v78
    %vm86 = vcmask 1043456
    %v87 = vsel %vm86, %v71, 0.0
    %v88 = vrot.slane %v87, 4
    %v89 = vadd.f32 %v87, %v88
    %v90 = vrot.slane %v89, 2
    %v91 = vadd.f32 %v89, %v90
    %v92 = vrot.slane %v91, 1
    %v93 = vadd.f32 %v91, %v92
    %v94 = vsel %vm86, %v82, 0.0
    %v95 = vrot.slane %v94, 4
    %v96 = vadd.f32 %v94, %v95
    %v97 = vrot.slane %v96, 2
    %v98 = vadd.f32 %v96, %v97
    %v99 = vrot.slane %v98, 1
    %v100 = vadd.f32 %v98, %v99
    %v101 = vsel %vm86, %v78, 0.0
    %v102 = vrot.slane %v101, 4
    %v103 = vadd.f32 %v101, %v102
    %v104 = vrot.slane %v103, 2
    %v105 = vadd.f32 %v103, %v104
    %v106 = vrot.slane %v105, 1
    %v107 = vadd.f32 %v105, %v106
    %v108 = vsel %vm86, %v83, 0.0
    %v109 = vrot.slane %v108, 4
    %v110 = vadd.f32 %v108, %v109
    %v111 = vrot.slane %v110, 2
    %v112 = vadd.f32 %v110, %v111
    %v113 = vrot.slane %v112, 1
    %v114 = vadd.f32 %v112, %v113
    %v119 = vcombine.low %v93, %v100
    %v120 = vcombine.low %v107, %v114
    %v122 = vunpack.c.l.s4 1966171168
    %v123 = vunpack.c.0.s8 %v122
    %v124 = vlaneseq
    %v125 = vshrl.u32 %v124, 7
    %v126 = vsub.s32 %v123, %v125
    %v127 = vrot.slane %v119, %v126
    %v129 = vunpack.c.l.s4 1966171168
    %v130 = vunpack.c.0.s8 %v129
    %v131 = vlaneseq
    %v132 = vshrl.u32 %v131, 7
    %v133 = vsub.s32 %v130, %v132
    %v134 = vrot.slane %v120, %v133
    %v135 = vcombine.low %v127, %v134
    %v137 = vunpack.c.l.s4 1966171168
    %v138 = vunpack.c.0.s8 %v137
    %v139 = vlaneseq
    %v140 = vshrl.u32 %v139, 7
    %v141 = vsub.s32 %v138, %v140
    %v142 = vrot.slane %v135, %v141
    %v144 = vadd.f32 %v79, %v142
    %v145 = vlaneseq
    %vm146 = vcmp.ge.s32.totalorder %v145, 0
    %vm147 = vcmp.lt.s32.totalorder %v145, 512
    %vm148 = vmand %vm146, %vm147
    %149 = vst.msk [vmem:[#allocation7] sm:$0xf] %vm148, %v144
    // Predicated region
    $region22: #{tpu_custom_call.1} parent=1 // pred_check
      _
    $region23: #{tpu_custom_call.1} parent=1 // pred_check_branch
      %151 = sbr.rel (0) target = $region25
    $region24: #{tpu_custom_call.1} parent=1 // pred_region
      %s153 = ssub.s32 64, 64
      %154 = vsyncadd [#allocation4], %s153
      %s156 = sshll.u32 [#allocation7], 4
      %s157 = int_to_ptr.vmem [resolvable:$true] %s156
      %159 = dma.vmem_to_hbm [thread:$0]  %s157, 64, %s2, [#allocation4]
    $region25: #{tpu_custom_call.1} parent=1 // pred_fallthru
      _
    // Predicated region
    $region26: #{tpu_custom_call.1} parent=1 // pred_check
      _
    $region27: #{tpu_custom_call.1} parent=1 // pred_check_branch
      %161 = sbr.rel (0) target = $region29
    $region28: #{tpu_custom_call.1} parent=1 // pred_region
      %162 = dma.done [#allocation4], 64
    $region29: #{tpu_custom_call.1} parent=1 // pred_fallthru
      _
    %163 = vsyncpa [#allocation3], 1
    %164 = vsyncpa [#allocation6], 1
    %165 = vsyncpa [#allocation4], 1

</llo_original>
